<compile_context>
chip_gen: v6e
topology: v6e:2x2x1
jax: 0.10.0
libtpu: 0.0.40
codegen_flags: <defaults>
</compile_context>

<pallas_src>
import jax
import jax.numpy as jnp
from jax.experimental import pallas as pl
from jax.experimental.pallas import tpu as pltpu


def _round_up(x, m):
    return ((x + m - 1) // m) * m


def _chip_params():
    """Returns (two_tensorcores, vmem_limit_bytes) for the current TPU gen."""
    try:
        kind = jax.devices()[0].device_kind.lower()
    except Exception:
        kind = ""
    if "v7" in kind:
        # v7x: 2 TensorCores / chip, 64 MiB physical VMEM -> 32 MiB scoped
        return True, 32 * 1024 * 1024
    # v5e / v6e: 1 TensorCore, 128 MiB physical VMEM -> generous 64 MiB scoped
    return False, 64 * 1024 * 1024


def baseline_kernel(x_ref, wfe_ref, bfe_ref, wcls_ref, bcls_ref, out_ref):
    # bf16 cast on the VPU right before the MXU op (free slot, no wrapper pass)
    x = x_ref[...].astype(jnp.bfloat16)
    # feature extractor: [tm, D_in] @ [D_in, P] -> f32 accumulate
    feats = jnp.dot(x, wfe_ref[...],
                    preferred_element_type=jnp.float32) + bfe_ref[...]
    feats_bf = feats.astype(jnp.bfloat16)            # lanes [F:P] are exactly 0
    # classifier: [tm, P] @ [P, P]; responses land in lanes [F:F+C], 0 elsewhere
    resp = jnp.dot(feats_bf, wcls_ref[...],
                   preferred_element_type=jnp.float32) + bcls_ref[...]
    # pack both results into a single lane-dense bf16 slab; the two operands
    # occupy disjoint lanes (the other is zero), so the add is exact packing.
    out_ref[...] = feats_bf + resp.astype(jnp.bfloat16)


def baseline_forward(data_t, w_fe, b_fe, w_cls, b_cls):
    """data_t: [B, T, 1, D_in]; returns dict like the PyTorch module."""
    B, T, _, D_in = data_t.shape
    F = w_fe.shape[0]          # feature dim (== input_dimension[1])
    C = w_cls.shape[0]         # num classes (== out_dimension[0])
    M = B * T

    # one lane-dense slab holds feats ++ responses
    P = _round_up(F + C, 128)

    two_cores, vmem_limit = _chip_params()

    # ---- row-tile selection tied to the real VMEM budget -------------------
    # double-buffered weight/bias tiles (constant index, still budgeted)
    wb_bytes = 2 * (D_in * P * 2 + P * 4 + P * P * 2 + P * 4)
    # per-row cost across double-buffered x (f32 in) + packed bf16 out tiles
    row_bytes = 2 * (D_in * 4 + P * 2)
    budget = max(vmem_limit - wb_bytes - (4 << 20), row_bytes * 16)
    tm_cap = max(16, (budget // row_bytes) // 16 * 16)
    tm = min(2048, _round_up(M, 16), tm_cap)

    if two_cores:
        nb = pl.cdiv(M, tm)
        if nb == 1 and M > 16:
            # split so both v7x TensorCores get a block
            tm = max(16, _round_up(pl.cdiv(M, 2), 16))
        elif nb > 1 and nb % 2 == 1:
            # keep an even block count for balanced megacore sharding
            tm = max(16, _round_up(pl.cdiv(M, nb + 1), 16))

    M_pad = pl.cdiv(M, tm) * tm
    grid = (M_pad // tm,)

    # ---- operands: x stays f32 (cast happens in-kernel) --------------------
    x = data_t.reshape(M, D_in)
    if M_pad != M:
        x = jnp.pad(x, ((0, M_pad - M), (0, 0)))

    w_fe_p = jnp.zeros((D_in, P), jnp.bfloat16).at[:, :F].set(
        jnp.transpose(w_fe).astype(jnp.bfloat16))
    b_fe_p = jnp.zeros((1, P), jnp.float32).at[0, :F].set(
        b_fe.astype(jnp.float32))
    # classifier reads lanes [0:F] of the feats slab, writes lanes [F:F+C]
    w_cls_p = jnp.zeros((P, P), jnp.bfloat16).at[:F, F:F + C].set(
        jnp.transpose(w_cls).astype(jnp.bfloat16))
    b_cls_p = jnp.zeros((1, P), jnp.float32).at[0, F:F + C].set(
        b_cls.astype(jnp.float32))

    # ---- advisory cost estimate for XLA scheduling --------------------------
    flops = 2 * M_pad * (D_in * P + P * P)
    bytes_accessed = (M_pad * D_in * 4                  # x (f32)
                      + D_in * P * 2 + P * P * 2        # weights (bf16)
                      + 2 * P * 4                       # biases (f32)
                      + M_pad * P * 2)                  # packed output (bf16)
    cost = pl.CostEstimate(flops=flops, transcendentals=0,
                           bytes_accessed=bytes_accessed)

    packed = pl.pallas_call(
        baseline_kernel,
        out_shape=jax.ShapeDtypeStruct((M_pad, P), jnp.bfloat16),
        grid_spec=pltpu.PrefetchScalarGridSpec(
            num_scalar_prefetch=0,
            grid=grid,
            in_specs=[
                pl.BlockSpec((tm, D_in), lambda i: (i, 0)),   # x rows (f32)
                pl.BlockSpec((D_in, P), lambda i: (0, 0)),    # fe weight
                pl.BlockSpec((1, P), lambda i: (0, 0)),       # fe bias
                pl.BlockSpec((P, P), lambda i: (0, 0)),       # cls weight
                pl.BlockSpec((1, P), lambda i: (0, 0)),       # cls bias
            ],
            out_specs=pl.BlockSpec((tm, P), lambda i: (i, 0)),
        ),
        compiler_params=pltpu.CompilerParams(
            dimension_semantics=("parallel",),
            vmem_limit_bytes=vmem_limit),
        cost_estimate=cost,
    )(x, w_fe_p, b_fe_p, w_cls_p, b_cls_p)

    feats = packed[:M, :F].astype(jnp.float32).reshape(B, T, 1, F)
    responses = packed[:M, F:F + C].astype(jnp.float32).reshape(B, T, 1, C)
    init_responses = responses[:, 0]                    # [B, 1, C]
    return dict(init_responses=init_responses,
                feats=jax.lax.stop_gradient(feats),     # .detach()
                responses=responses)


if __name__ == "__main__":
    # Small shapes consistent with the module's forward:
    #   input_dimension = (D_in, F), out_dimension = (C, F), seq_len = T
    B, T = 2, 8
    D_in, F, C = 32, 32, 4

    key = jax.random.PRNGKey(0)
    k_x, k_wfe, k_bfe, k_wcls, k_bcls = jax.random.split(key, 5)

    data_t = jax.random.normal(k_x, (B, T, 1, D_in), dtype=jnp.float32)
    w_fe = jax.random.normal(k_wfe, (F, D_in), dtype=jnp.float32) * 0.05
    b_fe = jax.random.normal(k_bfe, (F,), dtype=jnp.float32) * 0.05
    w_cls = jax.random.normal(k_wcls, (C, F), dtype=jnp.float32) * 0.05
    b_cls = jax.random.normal(k_bcls, (C,), dtype=jnp.float32) * 0.05

    out = baseline_forward(data_t, w_fe, b_fe, w_cls, b_cls)
    jax.block_until_ready(out["responses"])
    jax.block_until_ready(out["init_responses"])
    jax.block_until_ready(out["feats"])

    # sanity: pure-JAX reference with the same bf16-operand / f32-accumulate
    # numerics as the kernel (output bf16 rounding covered by tolerance)
    x_bf = data_t.reshape(B * T, D_in).astype(jnp.bfloat16)
    wfe_bf = jnp.transpose(w_fe).astype(jnp.bfloat16)
    wcls_bf = jnp.transpose(w_cls).astype(jnp.bfloat16)
    feats_ref = jnp.dot(x_bf, wfe_bf,
                        preferred_element_type=jnp.float32) + b_fe
    resp_ref = (jnp.dot(feats_ref.astype(jnp.bfloat16), wcls_bf,
                        preferred_element_type=jnp.float32)
                + b_cls).reshape(B, T, 1, C)

    assert out["responses"].shape == (B, T, 1, C)
    assert out["feats"].shape == (B, T, 1, F)
    assert out["init_responses"].shape == (B, 1, C)
    assert jnp.allclose(out["responses"], resp_ref, atol=1e-2, rtol=1e-2)
    assert jnp.allclose(out["feats"], feats_ref.reshape(B, T, 1, F),
                        atol=1e-2, rtol=1e-2)
    assert jnp.allclose(out["init_responses"], out["responses"][:, 0])

    print("KERNEL_OK")
</pallas_src>

<mosaic_0001>
module attributes {stable_mosaic.version = 11 : i64} {
  func.func @baseline_kernel(%arg0: i32, %arg1: memref<16x32xf32, #tpu.memory_space<vmem>>, %arg2: memref<32x128xbf16, #tpu.memory_space<vmem>>, %arg3: memref<1x128xf32, #tpu.memory_space<vmem>>, %arg4: memref<128x128xbf16, #tpu.memory_space<vmem>>, %arg5: memref<1x128xf32, #tpu.memory_space<vmem>>, %arg6: memref<16x128xbf16, #tpu.memory_space<vmem>>) attributes {dimension_semantics = [#tpu.dimension_semantics<parallel>], iteration_bounds = array<i64: 1>, scalar_prefetch = 0 : i64, scratch_operands = 0 : i64, tpu.core_type = #tpu.core_type<tc>, window_params = [{transform_indices = @transform_0, window_bounds = array<i64: 16, 32>}, {pipeline_mode = #tpu.pipeline_mode<synchronous>, transform_indices = @transform_1, window_bounds = array<i64: 32, 128>}, {pipeline_mode = #tpu.pipeline_mode<synchronous>, transform_indices = @transform_2, window_bounds = array<i64: 1, 128>}, {pipeline_mode = #tpu.pipeline_mode<synchronous>, transform_indices = @transform_3, window_bounds = array<i64: 128, 128>}, {pipeline_mode = #tpu.pipeline_mode<synchronous>, transform_indices = @transform_4, window_bounds = array<i64: 1, 128>}, {transform_indices = @transform_5, window_bounds = array<i64: 16, 128>}]} {
    %c0 = arith.constant 0 : index
    %c0_0 = arith.constant 0 : index
    %0 = vector.load %arg1[%c0, %c0_0] : memref<16x32xf32, #tpu.memory_space<vmem>>, vector<16x32xf32>
    %1 = arith.truncf %0 : vector<16x32xf32> to vector<16x32xbf16>
    %c0_1 = arith.constant 0 : index
    %c0_2 = arith.constant 0 : index
    %2 = vector.load %arg2[%c0_1, %c0_2] : memref<32x128xbf16, #tpu.memory_space<vmem>>, vector<32x128xbf16>
    %cst = arith.constant dense<0.000000e+00> : vector<16x128xf32>
    %3 = tpu.matmul %1, %2, %cst {dimension_numbers = #tpu.dot_dimension_numbers<[1], [0], [0], [1], [0, 0, 1, 1], [], []>} : vector<16x32xbf16>, vector<32x128xbf16>, vector<16x128xf32> -> vector<16x128xf32>
    %c0_3 = arith.constant 0 : index
    %c0_4 = arith.constant 0 : index
    %4 = vector.load %arg3[%c0_3, %c0_4] : memref<1x128xf32, #tpu.memory_space<vmem>>, vector<1x128xf32>
    %5 = vector.broadcast %4 : vector<1x128xf32> to vector<16x128xf32>
    %6 = arith.addf %3, %5 : vector<16x128xf32>
    %7 = arith.truncf %6 : vector<16x128xf32> to vector<16x128xbf16>
    %c0_5 = arith.constant 0 : index
    %c0_6 = arith.constant 0 : index
    %8 = vector.load %arg4[%c0_5, %c0_6] : memref<128x128xbf16, #tpu.memory_space<vmem>>, vector<128x128xbf16>
    %cst_7 = arith.constant dense<0.000000e+00> : vector<16x128xf32>
    %9 = tpu.matmul %7, %8, %cst_7 {dimension_numbers = #tpu.dot_dimension_numbers<[1], [0], [0], [1], [0, 0, 1, 1], [], []>} : vector<16x128xbf16>, vector<128x128xbf16>, vector<16x128xf32> -> vector<16x128xf32>
    %c0_8 = arith.constant 0 : index
    %c0_9 = arith.constant 0 : index
    %10 = vector.load %arg5[%c0_8, %c0_9] : memref<1x128xf32, #tpu.memory_space<vmem>>, vector<1x128xf32>
    %11 = vector.broadcast %10 : vector<1x128xf32> to vector<16x128xf32>
    %12 = arith.addf %9, %11 : vector<16x128xf32>
    %13 = arith.truncf %12 : vector<16x128xf32> to vector<16x128xbf16>
    %14 = arith.addf %7, %13 : vector<16x128xbf16>
    %c0_10 = arith.constant 0 : index
    %c0_11 = arith.constant 0 : index
    %15 = vector.load %arg6[%c0_10, %c0_11] : memref<16x128xbf16, #tpu.memory_space<vmem>>, vector<16x128xbf16>
    tpu.vector_store %arg6[%c0_10, %c0_11], %14 {strides = array<i32>} : memref<16x128xbf16, #tpu.memory_space<vmem>>, vector<16x128xbf16>,
    return
  }
  func.func @transform_0(%arg0: i32) -> (i32, i32) {
    %c0_i32 = arith.constant 0 : i32
    %c0_i32_0 = arith.constant 0 : i32
    return %arg0, %c0_i32 : i32, i32
  }
  func.func @transform_1(%arg0: i32) -> (i32, i32) {
    %c0_i32 = arith.constant 0 : i32
    %c0_i32_0 = arith.constant 0 : i32
    %c0_i32_1 = arith.constant 0 : i32
    return %c0_i32, %c0_i32_0 : i32, i32
  }
  func.func @transform_2(%arg0: i32) -> (i32, i32) {
    %c0_i32 = arith.constant 0 : i32
    %c0_i32_0 = arith.constant 0 : i32
    %c0_i32_1 = arith.constant 0 : i32
    return %c0_i32, %c0_i32_0 : i32, i32
  }
  func.func @transform_3(%arg0: i32) -> (i32, i32) {
    %c0_i32 = arith.constant 0 : i32
    %c0_i32_0 = arith.constant 0 : i32
    %c0_i32_1 = arith.constant 0 : i32
    return %c0_i32, %c0_i32_0 : i32, i32
  }
  func.func @transform_4(%arg0: i32) -> (i32, i32) {
    %c0_i32 = arith.constant 0 : i32
    %c0_i32_0 = arith.constant 0 : i32
    %c0_i32_1 = arith.constant 0 : i32
    return %c0_i32, %c0_i32_0 : i32, i32
  }
  func.func @transform_5(%arg0: i32) -> (i32, i32) {
    %c0_i32 = arith.constant 0 : i32
    %c0_i32_0 = arith.constant 0 : i32
    return %arg0, %c0_i32 : i32, i32
  }
}

</mosaic_0001>

<llo_original>
// kernel: tpu_custom_call.1
$region0: #{tpu_custom_call.1}
  #allocation0 [shape = 'u32[]', space=smem, size = 0x4, offset = 0x4, fixed_abs, tag = 'smem constant byte address 0x4 - core index']
  #allocation1 [shape = 'u32[144,128]{1,0:T(1,128)}', space=vmem, size = 0x12000, scoped, tag = 'internal scratch']
  %s0 = inlined_call_operand.hbm [shape: f32[16,32], index: 0, kind: input, shape index: {}]
  %s1 = inlined_call_operand.hbm [shape: bf16[32,128], index: 1, kind: input, shape index: {}]
  %s2 = inlined_call_operand.vmem [shape: f32[1,128], index: 2, kind: input, shape index: {}]
  %s3 = inlined_call_operand.hbm [shape: bf16[128,128], index: 3, kind: input, shape index: {}]
  %s4 = inlined_call_operand.vmem [shape: f32[1,128], index: 4, kind: input, shape index: {}]
  %s5 = inlined_call_operand.hbm [shape: bf16[16,128], index: 5, kind: output, shape index: {}]
  %s6 = sld [smem:[#allocation0]]
  $region42: #{tpu_custom_call.1} parent=0
    _
  %s8 = ssub.s32 1, %s6
  %s9 = scalar_select 0, %s8, %s6
  $region1: #{tpu_custom_call.1} parent=0
    #allocation2 [shape = 'u8[8192]{0}', space=vmem, size = 0x2000, scoped, tag = 'input window, operand 0, single buffered']
    #allocation3 [shape = 's32[1]{0}', space=sflag, size = 0x4, scoped, tag = 'scoped memory for tpu_custom_call.1']
    #allocation4 [shape = 's32[1]{0}', space=sflag, size = 0x4, scoped, tag = 'scoped memory for tpu_custom_call.1']
    #allocation5 [shape = 'u8[8192]{0}', space=vmem, size = 0x2000, scoped, tag = 'input window, operand 1, single buffered']
    #allocation6 [shape = 's32[1]{0}', space=sflag, size = 0x4, scoped, tag = 'scoped memory for tpu_custom_call.1']
    #allocation7 [shape = 'u8[32768]{0}', space=vmem, size = 0x8000, scoped, tag = 'input window, operand 3, single buffered']
    #allocation8 [shape = 'u8[4096]{0}', space=vmem, size = 0x1000, scoped, tag = 'output window, operand 0, single buffered']
    %10 = vsyncpa [#allocation3], 0
    %11 = vsyncpa [#allocation6], 0
    %12 = vsyncpa [#allocation4], 0
    // Predicated region
    $region2: #{tpu_custom_call.1} parent=1 // pred_check
      _
    $region3: #{tpu_custom_call.1} parent=1 // pred_check_branch
      %14 = sbr.rel (0) target = $region5
    $region4: #{tpu_custom_call.1} parent=1 // pred_region
      %s16 = ssub.s32 256, 256
      %17 = vsyncadd [#allocation3], %s16
      %s18 = sshll.u32 [#allocation2], 4
      %s19 = int_to_ptr.vmem [resolvable:$true] %s18
      %24 = dma.hbm_to_vmem [thread:$0]  %s0, 256, %s19, [#allocation3], 128, 128, 8
    $region5: #{tpu_custom_call.1} parent=1 // pred_fallthru
      _
    // Predicated region
    $region6: #{tpu_custom_call.1} parent=1 // pred_check
      _
    $region7: #{tpu_custom_call.1} parent=1 // pred_check_branch
      %26 = sbr.rel (0) target = $region9
    $region8: #{tpu_custom_call.1} parent=1 // pred_region
      %s28 = ssub.s32 256, 256
      %29 = vsyncadd [#allocation6], %s28
      %s30 = sshll.u32 [#allocation5], 4
      %s31 = int_to_ptr.vmem [resolvable:$true] %s30
      %36 = dma.hbm_to_vmem [thread:$0]  %s1, 256, %s31, [#allocation6], 64, 64, 4
    $region9: #{tpu_custom_call.1} parent=1 // pred_fallthru
      _
    // Predicated region
    $region10: #{tpu_custom_call.1} parent=1 // pred_check
      _
    $region11: #{tpu_custom_call.1} parent=1 // pred_check_branch
      %38 = sbr.rel (0) target = $region13
    $region12: #{tpu_custom_call.1} parent=1 // pred_region
      _
    $region13: #{tpu_custom_call.1} parent=1 // pred_fallthru
      _
    // Predicated region
    $region14: #{tpu_custom_call.1} parent=1 // pred_check
      _
    $region15: #{tpu_custom_call.1} parent=1 // pred_check_branch
      %40 = sbr.rel (0) target = $region17
    $region16: #{tpu_custom_call.1} parent=1 // pred_region
      %s42 = ssub.s32 1024, 1024
      %43 = vsyncadd [#allocation6], %s42
      %s44 = sshll.u32 [#allocation7], 4
      %s45 = int_to_ptr.vmem [resolvable:$true] %s44
      %50 = dma.hbm_to_vmem [thread:$0]  %s3, 1024, %s45, [#allocation6], 64, 64, 4
    $region17: #{tpu_custom_call.1} parent=1 // pred_fallthru
      _
    // Predicated region
    $region18: #{tpu_custom_call.1} parent=1 // pred_check
      _
    $region19: #{tpu_custom_call.1} parent=1 // pred_check_branch
      %52 = sbr.rel (0) target = $region21
    $region20: #{tpu_custom_call.1} parent=1 // pred_region
      _
    $region21: #{tpu_custom_call.1} parent=1 // pred_fallthru
      _
    // Predicated region
    $region22: #{tpu_custom_call.1} parent=1 // pred_check
      _
    $region23: #{tpu_custom_call.1} parent=1 // pred_check_branch
      %54 = sbr.rel (0) target = $region25
    $region24: #{tpu_custom_call.1} parent=1 // pred_region
      %55 = dma.done [#allocation3], 256
    $region25: #{tpu_custom_call.1} parent=1 // pred_fallthru
      _
    // Predicated region
    $region26: #{tpu_custom_call.1} parent=1 // pred_check
      _
    $region27: #{tpu_custom_call.1} parent=1 // pred_check_branch
      %57 = sbr.rel (0) target = $region29
    $region28: #{tpu_custom_call.1} parent=1 // pred_region
      %58 = dma.done [#allocation6], 256
    $region29: #{tpu_custom_call.1} parent=1 // pred_fallthru
      _
    // Predicated region
    $region30: #{tpu_custom_call.1} parent=1 // pred_check
      _
    $region31: #{tpu_custom_call.1} parent=1 // pred_check_branch
      %60 = sbr.rel (0) target = $region33
    $region32: #{tpu_custom_call.1} parent=1 // pred_region
      %61 = dma.done [#allocation6], 1024
    $region33: #{tpu_custom_call.1} parent=1 // pred_fallthru
      _
    %v63 = vld [vmem:[#allocation2] sm:$0xff]
    %v64 = vld [vmem:[#allocation2 + $0x8] sm:$0xff]
    %v65 = vpack.c.bf16 %v64, %v63
    %v66 = vld [vmem:[#allocation5] sm:$0xf]
    %v67 = vld [vmem:[#allocation5 + $0x4] sm:$0xf]
    %v68 = vld [vmem:[#allocation5 + $0x8] sm:$0xf]
    %v69 = vld [vmem:[#allocation5 + $0xc] sm:$0xf]
    %v70 = vld [vmem:[%s2] sm:$0x1]
    %v72 = vlaneseq
    %v73 = vshrl.u32 %v72, 7
    %v74 = vsub.s32 0, %v73
    %v75 = vrot.slane %v70, %v74
    %v81 = vunpack.c.l.b16 %v66
    %v82 = vunpack.c.l.b16 %v67
    %v83 = vunpack.c.l.b16 %v68
    %v84 = vunpack.c.l.b16 %v69
    %v85 = vpack.c.b16 %v82, %v81
    %v86 = vpack.c.b16 %v84, %v83
    %vm89 = vcmask 261120
    %v91 = vsel %vm89, %v65, 0
    %93 = vmatprep.subr.bf16.mxu0 0
    %94 = vmatpush1.bf16.msra.mxu0 0
    %95 = vmatprep.subr.bf16.mxu0 0
    %96 = vmatpush1.bf16.msra.mxu0 0
    %97 = vmatprep.subr.bf16.mxu0 0
    %98 = vmatpush1.bf16.msra.mxu0 0
    %99 = vmatprep.subr.bf16.mxu0 0
    %100 = vmatpush1.bf16.msra.mxu0 0
    %101 = vmatprep.subr.bf16.mxu0 0
    %102 = vmatpush1.bf16.msra.mxu0 0
    %103 = vmatprep.subr.bf16.mxu0 0
    %104 = vmatpush1.bf16.msra.mxu0 0
    %105 = vmatprep.subr.bf16.mxu0 0
    %106 = vmatpush1.bf16.msra.mxu0 %v86
    %107 = vmatprep.subr.bf16.mxu0 0
    %108 = vmatpush1.bf16.msra.mxu0 %v85
    %109 = vmatprep.subr.bf16.mxu0 0
    %110 = vmatpush2.bf16.msra.mxu0 0
    %111 = vmatprep.subr.bf16.mxu0 0
    %112 = vmatpush2.bf16.msra.mxu0 0
    %113 = vmatprep.subr.bf16.mxu0 0
    %114 = vmatpush2.bf16.msra.mxu0 0
    %115 = vmatprep.subr.bf16.mxu0 0
    %116 = vmatpush2.bf16.msra.mxu0 0
    %117 = vmatprep.subr.bf16.mxu0 0
    %118 = vmatpush2.bf16.msra.mxu0 0
    %119 = vmatprep.subr.bf16.mxu0 0
    %120 = vmatpush2.bf16.msra.mxu0 0
    %121 = vmatprep.subr.bf16.mxu0 0
    %122 = vmatpush2.bf16.msra.mxu0 0
    %123 = vmatprep.subr.bf16.mxu0 0
    %124 = vmatpush2.bf16.msra.mxu0 0
    %125 = vmatprep.mubr.bf16.mxu0 0
    %126 = vmatmul.mubr.bf16.gmra.mxu0 %v91
    %v127 = vpop.f32.mrf.mxu0
    %v128 = vadd.f32 %v75, %v127
    %v129 = vpop.f32.mrf.mxu0
    %v130 = vpop.f32.mrf.mxu0
    %v131 = vadd.f32 %v75, %v130
    %v132 = vpop.f32.mrf.mxu0
    %133 = vdwg.mxu0
    %v134 = vpack.c.bf16 %v131, %v128
    %v135 = vld [vmem:[#allocation7] sm:$0xf]
    %v136 = vld [vmem:[#allocation7 + $0x4] sm:$0xf]
    %v137 = vld [vmem:[#allocation7 + $0x8] sm:$0xf]
    %v138 = vld [vmem:[#allocation7 + $0xc] sm:$0xf]
    %v139 = vld [vmem:[#allocation7 + $0x10] sm:$0xf]
    %v140 = vld [vmem:[#allocation7 + $0x14] sm:$0xf]
    %v141 = vld [vmem:[#allocation7 + $0x18] sm:$0xf]
    %v142 = vld [vmem:[#allocation7 + $0x1c] sm:$0xf]
    %v143 = vld [vmem:[#allocation7 + $0x20] sm:$0xf]
    %v144 = vld [vmem:[#allocation7 + $0x24] sm:$0xf]
    %v145 = vld [vmem:[#allocation7 + $0x28] sm:$0xf]
    %v146 = vld [vmem:[#allocation7 + $0x2c] sm:$0xf]
    %v147 = vld [vmem:[#allocation7 + $0x30] sm:$0xf]
    %v148 = vld [vmem:[#allocation7 + $0x34] sm:$0xf]
    %v149 = vld [vmem:[#allocation7 + $0x38] sm:$0xf]
    %v150 = vld [vmem:[#allocation7 + $0x3c] sm:$0xf]
    %v151 = vld [vmem:[%s4] sm:$0x1]
    %v153 = vlaneseq
    %v154 = vshrl.u32 %v153, 7
    %v155 = vsub.s32 0, %v154
    %v156 = vrot.slane %v151, %v155
    %v174 = vunpack.c.l.b16 %v135
    %v175 = vunpack.c.l.b16 %v136
    %v176 = vunpack.c.l.b16 %v137
    %v177 = vunpack.c.l.b16 %v138
    %v178 = vunpack.c.l.b16 %v139
    %v179 = vunpack.c.l.b16 %v140
    %v180 = vunpack.c.l.b16 %v141
    %v181 = vunpack.c.l.b16 %v142
    %v182 = vunpack.c.l.b16 %v143
    %v183 = vunpack.c.l.b16 %v144
    %v184 = vunpack.c.l.b16 %v145
    %v185 = vunpack.c.l.b16 %v146
    %v186 = vunpack.c.l.b16 %v147
    %v187 = vunpack.c.l.b16 %v148
    %v188 = vunpack.c.l.b16 %v149
    %v189 = vunpack.c.l.b16 %v150
    %v190 = vpack.c.b16 %v175, %v174
    %v191 = vpack.c.b16 %v177, %v176
    %v192 = vpack.c.b16 %v179, %v178
    %v193 = vpack.c.b16 %v181, %v180
    %v194 = vpack.c.b16 %v183, %v182
    %v195 = vpack.c.b16 %v185, %v184
    %v196 = vpack.c.b16 %v187, %v186
    %v197 = vpack.c.b16 %v189, %v188
    %206 = vmatprep.subr.bf16.mxu0 0
    %207 = vmatpush1.bf16.msra.mxu0 %v197
    %208 = vmatprep.subr.bf16.mxu0 0
    %209 = vmatpush1.bf16.msra.mxu0 %v196
    %210 = vmatprep.subr.bf16.mxu0 0
    %211 = vmatpush1.bf16.msra.mxu0 %v195
    %212 = vmatprep.subr.bf16.mxu0 0
    %213 = vmatpush1.bf16.msra.mxu0 %v194
    %214 = vmatprep.subr.bf16.mxu0 0
    %215 = vmatpush1.bf16.msra.mxu0 %v193
    %216 = vmatprep.subr.bf16.mxu0 0
    %217 = vmatpush1.bf16.msra.mxu0 %v192
    %218 = vmatprep.subr.bf16.mxu0 0
    %219 = vmatpush1.bf16.msra.mxu0 %v191
    %220 = vmatprep.subr.bf16.mxu0 0
    %221 = vmatpush1.bf16.msra.mxu0 %v190
    %222 = vmatprep.subr.bf16.mxu0 0
    %223 = vmatpush2.bf16.msra.mxu0 0
    %224 = vmatprep.subr.bf16.mxu0 0
    %225 = vmatpush2.bf16.msra.mxu0 0
    %226 = vmatprep.subr.bf16.mxu0 0
    %227 = vmatpush2.bf16.msra.mxu0 0
    %228 = vmatprep.subr.bf16.mxu0 0
    %229 = vmatpush2.bf16.msra.mxu0 0
    %230 = vmatprep.subr.bf16.mxu0 0
    %231 = vmatpush2.bf16.msra.mxu0 0
    %232 = vmatprep.subr.bf16.mxu0 0
    %233 = vmatpush2.bf16.msra.mxu0 0
    %234 = vmatprep.subr.bf16.mxu0 0
    %235 = vmatpush2.bf16.msra.mxu0 0
    %236 = vmatprep.subr.bf16.mxu0 0
    %237 = vmatpush2.bf16.msra.mxu0 0
    %238 = vmatprep.mubr.bf16.mxu0 0
    %239 = vmatmul.mubr.bf16.gmra.mxu0 %v134
    %v240 = vpop.f32.mrf.mxu0
    %v241 = vadd.f32 %v156, %v240
    %v242 = vpop.f32.mrf.mxu0
    %v243 = vpop.f32.mrf.mxu0
    %v244 = vadd.f32 %v156, %v243
    %v245 = vpop.f32.mrf.mxu0
    %246 = vdwg.mxu0
    %v247 = vpack.c.bf16 %v244, %v241
    %v248 = vadd.bf16 %v134, %v247
    %v250 = vunpack.c.l.b16 %v248
    %v251 = vunpack.c.h.b16 %v248
    %v252 = vpack.c.b16 %v250, %v250
    %v253 = vpack.c.b16 %v251, %v251
    %256 = vst [vmem:[#allocation8] sm:$0xf] %v252
    %257 = vst [vmem:[#allocation8 + $0x4] sm:$0xf] %v253
    // Predicated region
    $region34: #{tpu_custom_call.1} parent=1 // pred_check
      _
    $region35: #{tpu_custom_call.1} parent=1 // pred_check_branch
      %259 = sbr.rel (0) target = $region37
    $region36: #{tpu_custom_call.1} parent=1 // pred_region
      %s261 = ssub.s32 128, 128
      %262 = vsyncadd [#allocation4], %s261
      %s263 = sshll.u32 [#allocation8], 4
      %s264 = int_to_ptr.vmem [resolvable:$true] %s263
      %269 = dma.vmem_to_hbm [thread:$0]  %s264, 128, %s5, [#allocation4], 64, 64, 4
    $region37: #{tpu_custom_call.1} parent=1 // pred_fallthru
      _
    // Predicated region
    $region38: #{tpu_custom_call.1} parent=1 // pred_check
      _
    $region39: #{tpu_custom_call.1} parent=1 // pred_check_branch
      %271 = sbr.rel (0) target = $region41
    $region40: #{tpu_custom_call.1} parent=1 // pred_region
      %272 = dma.done [#allocation4], 128
    $region41: #{tpu_custom_call.1} parent=1 // pred_fallthru
      _
    %273 = vsyncpa [#allocation3], 1
    %274 = vsyncpa [#allocation6], 1
    %275 = vsyncpa [#allocation4], 1

</llo_original>
